<compile_context>
chip_gen: v5e
topology: v5e:2x2
jax: 0.10.0
libtpu: 0.0.40
codegen_flags: <defaults>
</compile_context>

<pallas_src>
import jax
import jax.numpy as jnp
from jax.experimental import pallas as pl
from jax.experimental.pallas import tpu as pltpu


def _round_up(n, m):
    return ((n + m - 1) // m) * m


def _cdiv(a, b):
    return -(-a // b)


def _mlp_kernel(x_ref, w1_ref, w2_ref, w3_ref, pack_ref, o_ref):
    """Fused 4-layer MLP forward on one transposed batch tile.

    x_ref:    (F, tile_b)   bf16  (batch on the lane axis)
    w1_ref:   (128, F)      bf16  torch-orientation weights
    w2_ref:   (128, 128)    bf16
    w3_ref:   (32, 128)     bf16  (NOT padded)
    pack_ref: (128, 5)      f32   col0=b1, col1=b2, col2[:32]=b3,
                                  col3[:32]=w4, [0,4]=b4
    o_ref:    (1, tile_b)   f32   lane-dense output slab
    """
    bf16 = jnp.bfloat16
    x = x_ref[...]                                                    # bf16

    p = pack_ref[...]                                                 # (128, 5) f32
    b1 = p[:, 0:1]                                                    # (128, 1)
    b2 = p[:, 1:2]                                                    # (128, 1)
    b3 = p[:32, 2:3]                                                  # (32, 1)
    w4 = p[:32, 3:4]                                                  # (32, 1)
    b4 = p[0:1, 4:5]                                                  # (1, 1)

    # Layer 1: (128, F) @ (F, tile_b) -> f32; bias + ReLU in f32.
    h = jnp.dot(w1_ref[...], x, preferred_element_type=jnp.float32) + b1
    h = jnp.maximum(h, 0.0)

    # Layer 2: (128, 128) @ (128, tile_b)
    h = jnp.dot(w2_ref[...], h.astype(bf16),
                preferred_element_type=jnp.float32) + b2
    h = jnp.maximum(h, 0.0)

    # Layer 3: (32, 128) @ (128, tile_b) -> (32, tile_b)  (no padding)
    h = jnp.dot(w3_ref[...], h.astype(bf16),
                preferred_element_type=jnp.float32) + b3
    h = jnp.maximum(h, 0.0)

    # Layer 4 (out width 1): broadcast-multiply + 32-sublane reduction on the
    # VPU/XLU instead of a degenerate 1-row MXU matmul.
    y = jnp.sum(h * w4, axis=0, keepdims=True) + b4                   # (1, tile_b)

    o_ref[...] = y.astype(o_ref.dtype)


def mlp_forward(x, params, *, tile_b=None):
    """Run the fused MLP Pallas kernel.

    x:       (B, F) float32
    params:  torch-layout params: w1 (128,F), w2 (128,128), w3 (32,128),
             w4 (1,32); b1 (128,), b2 (128,), b3 (32,), b4 (1,)
    Returns  (B, 1) float32.
    """
    B, F = x.shape
    H1, H2, H3 = 128, 128, 32
    bf16 = jnp.bfloat16

    # ---- tile selection -------------------------------------------------
    # Cap the tile at 4096 lanes; choose num_tiles FIRST so padding is
    # bounded by <128 rows per tile (not rounded up to a multiple of the
    # cap).  Use >=2 (even) tiles for B >= 256 so v7x's two TensorCores
    # both get work under dimension_semantics=("parallel",).
    cap = 4096
    if tile_b is None:
        num_tiles = max(_cdiv(B, cap), 2 if B >= 256 else 1)
        if num_tiles > 1:
            num_tiles += num_tiles % 2          # even split for 2 TCs
        tile_b = _round_up(_cdiv(B, num_tiles), 128)
    else:
        tile_b = _round_up(tile_b, 128)
        num_tiles = _cdiv(B, tile_b)
    B_pad = num_tiles * tile_b

    # ---- parameter prep -------------------------------------------------
    # bf16 MXU weights; all small operands packed into one (128, 5) f32 array.
    w1 = params["w1"].astype(bf16)                                    # (128, F)
    w2 = params["w2"].astype(bf16)                                    # (128, 128)
    w3 = params["w3"].astype(bf16)                                    # (32, 128)
    pack = jnp.zeros((H1, 5), jnp.float32)
    pack = pack.at[:, 0].set(params["b1"].astype(jnp.float32))
    pack = pack.at[:, 1].set(params["b2"].astype(jnp.float32))
    pack = pack.at[:H3, 2].set(params["b3"].astype(jnp.float32))
    pack = pack.at[:H3, 3].set(params["w4"][0].astype(jnp.float32))
    pack = pack.at[0, 4].set(params["b4"].astype(jnp.float32)[0])

    # Transposed, lane-dense, bf16 input (batch on the lane axis).  The
    # wrapper-side transpose+cast is one extra XLA pass over x; negligible at
    # large B (<5% of traffic), acceptable here.
    xp = x if B_pad == B else jnp.pad(x, ((0, B_pad - B), (0, 0)))
    xT = jnp.transpose(xp).astype(bf16)                               # (F, B_pad)

    flops = 2 * B_pad * (F * H1 + H1 * H2 + H2 * H3 + H3)
    bytes_accessed = (xT.size * 2                      # bf16 input
                      + B_pad * 4                      # f32 output
                      + (w1.size + w2.size + w3.size) * 2
                      + pack.size * 4)
    cost = pl.CostEstimate(flops=flops, transcendentals=0,
                           bytes_accessed=bytes_accessed)

    def full(a):
        # Whole parameter array every grid step; constant index_map keeps it
        # resident in VMEM (no re-DMA between consecutive steps).
        return pl.BlockSpec(a.shape, lambda i: (0, 0))

    out = pl.pallas_call(
        _mlp_kernel,
        out_shape=jax.ShapeDtypeStruct((1, B_pad), jnp.float32),
        grid=(num_tiles,),
        in_specs=[
            pl.BlockSpec((F, tile_b), lambda i: (0, i)),              # x tile
            full(w1), full(w2), full(w3), full(pack),
        ],
        out_specs=pl.BlockSpec((1, tile_b), lambda i: (0, i)),        # lane-dense
        compiler_params=pltpu.CompilerParams(
            dimension_semantics=("parallel",),
            vmem_limit_bytes=32 * 1024 * 1024,
        ),
        cost_estimate=cost,
    )(xT, w1, w2, w3, pack)

    # (1, B_pad) -> (B, 1)
    return out.reshape(-1)[:B].reshape(B, 1)


def init_params(key, in_features):
    """PyTorch-layout Linear params: weight (out, in), bias (out,),
    uniform(-1/sqrt(in), 1/sqrt(in)) like nn.Linear's default init."""
    dims = [(in_features, 128), (128, 128), (128, 32), (32, 1)]
    params = {}
    for idx, (fan_in, fan_out) in enumerate(dims, start=1):
        key, kw, kb = jax.random.split(key, 3)
        bound = 1.0 / (fan_in ** 0.5)
        params[f"w{idx}"] = jax.random.uniform(
            kw, (fan_out, fan_in), jnp.float32, -bound, bound)
        params[f"b{idx}"] = jax.random.uniform(
            kb, (fan_out,), jnp.float32, -bound, bound)
    return params


def reference_forward_f32(x, p):
    """Pure-f32 JAX reference (exact PyTorch math)."""
    h = jnp.maximum(x @ p["w1"].T + p["b1"], 0.0)
    h = jnp.maximum(h @ p["w2"].T + p["b2"], 0.0)
    h = jnp.maximum(h @ p["w3"].T + p["b3"], 0.0)
    return h @ p["w4"].T + p["b4"]


def reference_forward_matched(x, p):
    """Reference mirroring the kernel's precision (bf16 MXU inputs, f32 accum,
    f32 bias/ReLU, f32 final layer)."""
    bf16 = jnp.bfloat16

    def layer(h, w, b):
        y = jnp.dot(h.astype(bf16), w.astype(bf16).T,
                    preferred_element_type=jnp.float32) + b
        return jnp.maximum(y, 0.0)

    h = layer(x, p["w1"], p["b1"])
    h = layer(h, p["w2"], p["b2"])
    h = layer(h, p["w3"], p["b3"])
    return jnp.dot(h, p["w4"].T, preferred_element_type=jnp.float32) + p["b4"]


if __name__ == "__main__":
    key = jax.random.PRNGKey(0)

    batch = 300          # exercises padding and the >=2-tile (megacore) path
    in_features = 8      # tabular feature count (x.shape[1] in the module)

    key, kx = jax.random.split(key)
    x = jax.random.normal(kx, (batch, in_features), jnp.float32)
    params = init_params(key, in_features)

    out = jax.block_until_ready(mlp_forward(x, params))
    assert out.shape == (batch, 1)

    ref_matched = reference_forward_matched(x, params)
    ref_f32 = reference_forward_f32(x, params)
    assert jnp.allclose(out, ref_matched, atol=2e-3, rtol=2e-3), \
        "mismatch vs precision-matched reference"
    assert jnp.allclose(out, ref_f32, atol=6e-2, rtol=6e-2), \
        "mismatch vs f32 reference (beyond bf16 tolerance)"

    print("KERNEL_OK")
</pallas_src>

<mosaic_0001>
module attributes {stable_mosaic.version = 11 : i64} {
  func.func @_mlp_kernel(%arg0: i32, %arg1: memref<8x256xbf16, #tpu.memory_space<vmem>>, %arg2: memref<128x8xbf16, #tpu.memory_space<vmem>>, %arg3: memref<128x128xbf16, #tpu.memory_space<vmem>>, %arg4: memref<32x128xbf16, #tpu.memory_space<vmem>>, %arg5: memref<128x5xf32, #tpu.memory_space<vmem>>, %arg6: memref<1x256xf32, #tpu.memory_space<vmem>>) attributes {dimension_semantics = [#tpu.dimension_semantics<parallel>], iteration_bounds = array<i64: 2>, scalar_prefetch = 0 : i64, scratch_operands = 0 : i64, tpu.core_type = #tpu.core_type<tc>, window_params = [{transform_indices = @transform_0, window_bounds = array<i64: 8, 256>}, {pipeline_mode = #tpu.pipeline_mode<synchronous>, transform_indices = @transform_1, window_bounds = array<i64: 128, 8>}, {pipeline_mode = #tpu.pipeline_mode<synchronous>, transform_indices = @transform_2, window_bounds = array<i64: 128, 128>}, {pipeline_mode = #tpu.pipeline_mode<synchronous>, transform_indices = @transform_3, window_bounds = array<i64: 32, 128>}, {pipeline_mode = #tpu.pipeline_mode<synchronous>, transform_indices = @transform_4, window_bounds = array<i64: 128, 5>}, {transform_indices = @transform_5, window_bounds = array<i64: 1, 256>}]} {
    %c0 = arith.constant 0 : index
    %c0_0 = arith.constant 0 : index
    %0 = vector.load %arg1[%c0, %c0_0] : memref<8x256xbf16, #tpu.memory_space<vmem>>, vector<8x256xbf16>
    %c0_1 = arith.constant 0 : index
    %c0_2 = arith.constant 0 : index
    %1 = vector.load %arg5[%c0_1, %c0_2] : memref<128x5xf32, #tpu.memory_space<vmem>>, vector<128x5xf32>
    %2 = vector.extract_strided_slice %1 {offsets = [0, 0], sizes = [128, 1], strides = [1, 1]} : vector<128x5xf32> to vector<128x1xf32>
    %3 = vector.extract_strided_slice %1 {offsets = [0, 1], sizes = [128, 1], strides = [1, 1]} : vector<128x5xf32> to vector<128x1xf32>
    %4 = vector.extract_strided_slice %1 {offsets = [0, 2], sizes = [32, 1], strides = [1, 1]} : vector<128x5xf32> to vector<32x1xf32>
    %5 = vector.extract_strided_slice %1 {offsets = [0, 3], sizes = [32, 1], strides = [1, 1]} : vector<128x5xf32> to vector<32x1xf32>
    %6 = vector.extract_strided_slice %1 {offsets = [0, 4], sizes = [1, 1], strides = [1, 1]} : vector<128x5xf32> to vector<1x1xf32>
    %c0_3 = arith.constant 0 : index
    %c0_4 = arith.constant 0 : index
    %7 = vector.load %arg2[%c0_3, %c0_4] : memref<128x8xbf16, #tpu.memory_space<vmem>>, vector<128x8xbf16>
    %cst = arith.constant dense<0.000000e+00> : vector<128x256xf32>
    %8 = tpu.matmul %7, %0, %cst {dimension_numbers = #tpu.dot_dimension_numbers<[1], [0], [0], [1], [0, 0, 1, 1], [], []>} : vector<128x8xbf16>, vector<8x256xbf16>, vector<128x256xf32> -> vector<128x256xf32>
    %9 = vector.broadcast %2 : vector<128x1xf32> to vector<128x256xf32>
    %10 = arith.addf %8, %9 : vector<128x256xf32>
    %cst_5 = arith.constant 0.000000e+00 : f32
    %11 = vector.broadcast %cst_5 : f32 to vector<128x256xf32>
    %12 = arith.maximumf %10, %11 : vector<128x256xf32>
    %c0_6 = arith.constant 0 : index
    %c0_7 = arith.constant 0 : index
    %13 = vector.load %arg3[%c0_6, %c0_7] : memref<128x128xbf16, #tpu.memory_space<vmem>>, vector<128x128xbf16>
    %14 = arith.truncf %12 : vector<128x256xf32> to vector<128x256xbf16>
    %cst_8 = arith.constant dense<0.000000e+00> : vector<128x256xf32>
    %15 = tpu.matmul %13, %14, %cst_8 {dimension_numbers = #tpu.dot_dimension_numbers<[1], [0], [0], [1], [0, 0, 1, 1], [], []>} : vector<128x128xbf16>, vector<128x256xbf16>, vector<128x256xf32> -> vector<128x256xf32>
    %16 = vector.broadcast %3 : vector<128x1xf32> to vector<128x256xf32>
    %17 = arith.addf %15, %16 : vector<128x256xf32>
    %cst_9 = arith.constant 0.000000e+00 : f32
    %18 = vector.broadcast %cst_9 : f32 to vector<128x256xf32>
    %19 = arith.maximumf %17, %18 : vector<128x256xf32>
    %c0_10 = arith.constant 0 : index
    %c0_11 = arith.constant 0 : index
    %20 = vector.load %arg4[%c0_10, %c0_11] : memref<32x128xbf16, #tpu.memory_space<vmem>>, vector<32x128xbf16>
    %21 = arith.truncf %19 : vector<128x256xf32> to vector<128x256xbf16>
    %cst_12 = arith.constant dense<0.000000e+00> : vector<32x256xf32>
    %22 = tpu.matmul %20, %21, %cst_12 {dimension_numbers = #tpu.dot_dimension_numbers<[1], [0], [0], [1], [0, 0, 1, 1], [], []>} : vector<32x128xbf16>, vector<128x256xbf16>, vector<32x256xf32> -> vector<32x256xf32>
    %23 = vector.broadcast %4 : vector<32x1xf32> to vector<32x256xf32>
    %24 = arith.addf %22, %23 : vector<32x256xf32>
    %cst_13 = arith.constant 0.000000e+00 : f32
    %25 = vector.broadcast %cst_13 : f32 to vector<32x256xf32>
    %26 = arith.maximumf %24, %25 : vector<32x256xf32>
    %27 = vector.broadcast %5 : vector<32x1xf32> to vector<32x256xf32>
    %28 = arith.mulf %26, %27 : vector<32x256xf32>
    %cst_14 = arith.constant dense<0.000000e+00> : vector<256xf32>
    %29 = vector.multi_reduction <add>, %28, %cst_14 [0] : vector<32x256xf32> to vector<256xf32>
    %30 = vector.shape_cast %29 : vector<256xf32> to vector<1x256xf32>
    %31 = vector.broadcast %6 : vector<1x1xf32> to vector<1x256xf32>
    %32 = arith.addf %30, %31 : vector<1x256xf32>
    %c0_15 = arith.constant 0 : index
    %c0_16 = arith.constant 0 : index
    %33 = vector.load %arg6[%c0_15, %c0_16] : memref<1x256xf32, #tpu.memory_space<vmem>>, vector<1x256xf32>
    tpu.vector_store %arg6[%c0_15, %c0_16], %32 {strides = array<i32>} : memref<1x256xf32, #tpu.memory_space<vmem>>, vector<1x256xf32>,
    return
  }
  func.func @transform_0(%arg0: i32) -> (i32, i32) {
    %c0_i32 = arith.constant 0 : i32
    %c0_i32_0 = arith.constant 0 : i32
    return %c0_i32, %arg0 : i32, i32
  }
  func.func @transform_1(%arg0: i32) -> (i32, i32) {
    %c0_i32 = arith.constant 0 : i32
    %c0_i32_0 = arith.constant 0 : i32
    %c0_i32_1 = arith.constant 0 : i32
    return %c0_i32, %c0_i32_0 : i32, i32
  }
  func.func @transform_2(%arg0: i32) -> (i32, i32) {
    %c0_i32 = arith.constant 0 : i32
    %c0_i32_0 = arith.constant 0 : i32
    %c0_i32_1 = arith.constant 0 : i32
    return %c0_i32, %c0_i32_0 : i32, i32
  }
  func.func @transform_3(%arg0: i32) -> (i32, i32) {
    %c0_i32 = arith.constant 0 : i32
    %c0_i32_0 = arith.constant 0 : i32
    %c0_i32_1 = arith.constant 0 : i32
    return %c0_i32, %c0_i32_0 : i32, i32
  }
  func.func @transform_4(%arg0: i32) -> (i32, i32) {
    %c0_i32 = arith.constant 0 : i32
    %c0_i32_0 = arith.constant 0 : i32
    %c0_i32_1 = arith.constant 0 : i32
    return %c0_i32, %c0_i32_0 : i32, i32
  }
  func.func @transform_5(%arg0: i32) -> (i32, i32) {
    %c0_i32 = arith.constant 0 : i32
    %c0_i32_0 = arith.constant 0 : i32
    return %c0_i32, %arg0 : i32, i32
  }
}

</mosaic_0001>

<llo_original>
// kernel: tpu_custom_call.1
$region0: #{tpu_custom_call.1}
  #allocation0 [shape = 'u32[]', space=smem, size = 0x4, offset = 0x4, fixed_abs, tag = 'smem constant byte address 0x4 - core index']
  #allocation1 [shape = 'u32[72,128]{1,0:T(1,128)}', space=vmem, size = 0x9000, scoped, tag = 'internal scratch']
  %s0 = inlined_call_operand.vmem [shape: bf16[8,512], index: 0, kind: input, shape index: {}]
  %s1 = inlined_call_operand.vmem [shape: bf16[128,8], index: 1, kind: input, shape index: {}]
  %s2 = inlined_call_operand.vmem [shape: bf16[128,128], index: 2, kind: input, shape index: {}]
  %s3 = inlined_call_operand.vmem [shape: bf16[32,128], index: 3, kind: input, shape index: {}]
  %s4 = inlined_call_operand.vmem [shape: f32[128,5], index: 4, kind: input, shape index: {}]
  %s5 = inlined_call_operand.hbm [shape: f32[1,512], index: 5, kind: output, shape index: {}]
  %s6 = sld [smem:[#allocation0]]
  $region53: #{tpu_custom_call.1} parent=0
    _
  %s8 = ssub.s32 1, %s6
  %s9 = scalar_select 0, %s8, %s6
  $region1: #{tpu_custom_call.1} parent=0
    #allocation2 [shape = 'u8[2048]{0}', space=vmem, size = 0x800, scoped, tag = 'output window, operand 0']
    #allocation3 [shape = 's32[2]{0}', space=sflag, size = 0x8, scoped, tag = 'scoped memory for tpu_custom_call.1']
    %10 = vsyncpa [#allocation3], 0
    %s11 = scalar_lea.sflag [#allocation3], 1
    %12 = vsyncpa %s11, 0
    loop: start=0, step=1, limit=4
    $region2: #{tpu_custom_call.1} parent=1 // loop_pre_header
      _
    $region3: #{tpu_custom_call.1} parent=1 // loop_header
      %s14 = sphi 0, %s18
      %p15 = scmp.ge.s32.totalorder %s14, 4
      %s24 = sphi 0, %s26
      %s27 = sphi 0, %s24
      %s28 = sphi 0, %s27
      %s44 = sphi 0, %s28
      %s48 = sphi 0, %s48
      %s50 = sphi 0, %s48
      %s51 = sphi 0, %s50
      %s65 = sphi 0, %s51
      %s69 = sphi 0, %s69
      %s71 = sphi 0, %s69
      %s72 = sphi 0, %s71
      %s86 = sphi 0, %s72
      %s90 = sphi 0, %s90
      %s92 = sphi 0, %s90
      %s93 = sphi 0, %s92
      %s107 = sphi 0, %s93
      %s111 = sphi 0, %s111
      %s113 = sphi 0, %s111
      %s114 = sphi 0, %s113
      %s128 = sphi 0, %s114
      %s134 = sphi 0, %s136
      %s137 = sphi 0, %s134
      %s138 = sphi 0, %s137
      %s154 = sphi 0, %s138
    $region4: #{tpu_custom_call.1} parent=1 // loop_header_branch
      %17 = sbr.rel (%p15) target = $region8
    $region5: #{tpu_custom_call.1} parent=1 // loop_body
      %s19 = ssub.s32 %s14, 1
      %s20 = ssub.s32 %s14, 2
      %s21 = sadd.s32 %s14, 1
      %s22 = ssub.s32 %s14, %s21
      %p23 = scmp.eq.s32.totalorder %s22, 0
      %s25 = sadd.s32 %s24, 1
      %s26 = scalar_select %p23, %s24, %s25
      %p29 = pneg %p23
      %p30 = scmp.eq.s32.totalorder %s14, 1
      %p31 = por %p29, %p30
      %p32 = scmp.ne.s32.totalorder %s24, %s27
      %p33 = scmp.eq.s32.totalorder %s14, 0
      %p34 = por %p32, %p33
      %p35 = scmp.ne.s32.totalorder %s24, %s27
      %p36 = scmp.eq.s32.totalorder %s19, 1
      %p37 = por %p35, %p36
      %p38 = scmp.ne.s32.totalorder %s27, %s28
      %p39 = scmp.eq.s32.totalorder %s19, 0
      %p40 = por %p38, %p39
      %p41 = scmp.ne.s32.totalorder %s27, %s28
      %p42 = scmp.eq.s32.totalorder %s20, 1
      %p43 = por %p41, %p42
      %p45 = scmp.ne.s32.totalorder %s28, %s44
      %p46 = scmp.eq.s32.totalorder %s20, 0
      %p47 = por %p45, %p46
      %s49 = sadd.s32 %s48, 1
      %p52 = scmp.eq.s32.totalorder %s14, 1
      %p53 = scmp.ne.s32.totalorder %s48, %s50
      %p54 = scmp.eq.s32.totalorder %s14, 0
      %p55 = por %p53, %p54
      %p56 = scmp.ne.s32.totalorder %s48, %s50
      %p57 = scmp.eq.s32.totalorder %s19, 1
      %p58 = por %p56, %p57
      %p59 = scmp.ne.s32.totalorder %s50, %s51
      %p60 = scmp.eq.s32.totalorder %s19, 0
      %p61 = por %p59, %p60
      %p62 = scmp.ne.s32.totalorder %s50, %s51
      %p63 = scmp.eq.s32.totalorder %s20, 1
      %p64 = por %p62, %p63
      %p66 = scmp.ne.s32.totalorder %s51, %s65
      %p67 = scmp.eq.s32.totalorder %s20, 0
      %p68 = por %p66, %p67
      %s70 = sadd.s32 %s69, 1
      %p73 = scmp.eq.s32.totalorder %s14, 1
      %p74 = scmp.ne.s32.totalorder %s69, %s71
      %p75 = scmp.eq.s32.totalorder %s14, 0
      %p76 = por %p74, %p75
      %p77 = scmp.ne.s32.totalorder %s69, %s71
      %p78 = scmp.eq.s32.totalorder %s19, 1
      %p79 = por %p77, %p78
      %p80 = scmp.ne.s32.totalorder %s71, %s72
      %p81 = scmp.eq.s32.totalorder %s19, 0
      %p82 = por %p80, %p81
      %p83 = scmp.ne.s32.totalorder %s71, %s72
      %p84 = scmp.eq.s32.totalorder %s20, 1
      %p85 = por %p83, %p84
      %p87 = scmp.ne.s32.totalorder %s72, %s86
      %p88 = scmp.eq.s32.totalorder %s20, 0
      %p89 = por %p87, %p88
      %s91 = sadd.s32 %s90, 1
      %p94 = scmp.eq.s32.totalorder %s14, 1
      %p95 = scmp.ne.s32.totalorder %s90, %s92
      %p96 = scmp.eq.s32.totalorder %s14, 0
      %p97 = por %p95, %p96
      %p98 = scmp.ne.s32.totalorder %s90, %s92
      %p99 = scmp.eq.s32.totalorder %s19, 1
      %p100 = por %p98, %p99
      %p101 = scmp.ne.s32.totalorder %s92, %s93
      %p102 = scmp.eq.s32.totalorder %s19, 0
      %p103 = por %p101, %p102
      %p104 = scmp.ne.s32.totalorder %s92, %s93
      %p105 = scmp.eq.s32.totalorder %s20, 1
      %p106 = por %p104, %p105
      %p108 = scmp.ne.s32.totalorder %s93, %s107
      %p109 = scmp.eq.s32.totalorder %s20, 0
      %p110 = por %p108, %p109
      %s112 = sadd.s32 %s111, 1
      %p115 = scmp.eq.s32.totalorder %s14, 1
      %p116 = scmp.ne.s32.totalorder %s111, %s113
      %p117 = scmp.eq.s32.totalorder %s14, 0
      %p118 = por %p116, %p117
      %p119 = scmp.ne.s32.totalorder %s111, %s113
      %p120 = scmp.eq.s32.totalorder %s19, 1
      %p121 = por %p119, %p120
      %p122 = scmp.ne.s32.totalorder %s113, %s114
      %p123 = scmp.eq.s32.totalorder %s19, 0
      %p124 = por %p122, %p123
      %p125 = scmp.ne.s32.totalorder %s113, %s114
      %p126 = scmp.eq.s32.totalorder %s20, 1
      %p127 = por %p125, %p126
      %p129 = scmp.ne.s32.totalorder %s114, %s128
      %p130 = scmp.eq.s32.totalorder %s20, 0
      %p131 = por %p129, %p130
      %s132 = ssub.s32 %s14, %s21
      %p133 = scmp.eq.s32.totalorder %s132, 0
      %s135 = sadd.s32 %s134, 1
      %s136 = scalar_select %p133, %s134, %s135
      %p139 = pneg %p133
      %p140 = scmp.eq.s32.totalorder %s14, 1
      %p141 = por %p139, %p140
      %p142 = scmp.ne.s32.totalorder %s134, %s137
      %p143 = scmp.eq.s32.totalorder %s14, 0
      %p144 = por %p142, %p143
      %p145 = scmp.ne.s32.totalorder %s134, %s137
      %p146 = scmp.eq.s32.totalorder %s19, 1
      %p147 = por %p145, %p146
      %p148 = scmp.ne.s32.totalorder %s137, %s138
      %p149 = scmp.eq.s32.totalorder %s19, 0
      %p150 = por %p148, %p149
      %p151 = scmp.ne.s32.totalorder %s137, %s138
      %p152 = scmp.eq.s32.totalorder %s20, 1
      %p153 = por %p151, %p152
      %p155 = scmp.ne.s32.totalorder %s138, %s154
      %p156 = scmp.eq.s32.totalorder %s20, 0
      %p157 = por %p155, %p156
      %p158 = scmp.le.s32.totalorder 1, %s14
      %p159 = scmp.lt.s32.totalorder %s14, 3
      %p160 = pnand %p158, %p159
      %p161 = pneg %p160
      // Predicated region
      $region9: #{tpu_custom_call.1} parent=5 // pred_check
        _
      $region10: #{tpu_custom_call.1} parent=5 // pred_check_branch
        %163 = sbr.rel (%p160) target = $region12
      $region11: #{tpu_custom_call.1} parent=5 // pred_region
        %s164 = ssub.s32 %s14, 1
        // Predicated region
        $region13: #{tpu_custom_call.1} parent=11 // pred_check
          %p165 = pneg %p61
        $region14: #{tpu_custom_call.1} parent=11 // pred_check_branch
          %167 = sbr.rel (%p165) target = $region16
        $region15: #{tpu_custom_call.1} parent=11 // pred_region
          _
        $region16: #{tpu_custom_call.1} parent=11 // pred_fallthru
          _
        // Predicated region
        $region17: #{tpu_custom_call.1} parent=11 // pred_check
          %p168 = pneg %p82
        $region18: #{tpu_custom_call.1} parent=11 // pred_check_branch
          %170 = sbr.rel (%p168) target = $region20
        $region19: #{tpu_custom_call.1} parent=11 // pred_region
          _
        $region20: #{tpu_custom_call.1} parent=11 // pred_fallthru
          _
        // Predicated region
        $region21: #{tpu_custom_call.1} parent=11 // pred_check
          %p171 = pneg %p103
        $region22: #{tpu_custom_call.1} parent=11 // pred_check_branch
          %173 = sbr.rel (%p171) target = $region24
        $region23: #{tpu_custom_call.1} parent=11 // pred_region
          _
        $region24: #{tpu_custom_call.1} parent=11 // pred_fallthru
          _
        // Predicated region
        $region25: #{tpu_custom_call.1} parent=11 // pred_check
          %p174 = pneg %p124
        $region26: #{tpu_custom_call.1} parent=11 // pred_check_branch
          %176 = sbr.rel (%p174) target = $region28
        $region27: #{tpu_custom_call.1} parent=11 // pred_region
          _
        $region28: #{tpu_custom_call.1} parent=11 // pred_fallthru
          _
      $region12: #{tpu_custom_call.1} parent=5 // pred_fallthru
        _
      %p177 = scmp.lt.s32.totalorder %s14, 2
      // Predicated region
      $region29: #{tpu_custom_call.1} parent=5 // pred_check
        %p178 = pneg %p177
      $region30: #{tpu_custom_call.1} parent=5 // pred_check_branch
        %180 = sbr.rel (%p178) target = $region32
      $region31: #{tpu_custom_call.1} parent=5 // pred_region
        // Predicated region
        $region33: #{tpu_custom_call.1} parent=31 // pred_check
          %p181 = pneg %p34
        $region34: #{tpu_custom_call.1} parent=31 // pred_check_branch
          %183 = sbr.rel (%p181) target = $region36
        $region35: #{tpu_custom_call.1} parent=31 // pred_region
          %s184 = smul.u32 2, %s14
          %p185 = scmp.lt.s32.totalorder %s184, 3
          %s186 = scalar_select %p185, %s184, 3
          %s187 = smul.addr %s186, 4
          %s188 = scalar_lea.vmem %s0, %s187
          %s189 = smul.u32 2, %s14
        $region36: #{tpu_custom_call.1} parent=31 // pred_fallthru
          _
      $region32: #{tpu_custom_call.1} parent=5 // pred_fallthru
        _
      %p190 = scmp.le.s32.totalorder 1, %s14
      %p191 = scmp.lt.s32.totalorder %s14, 3
      %p192 = pnand %p190, %p191
      %p193 = pneg %p192
      // Predicated region
      $region37: #{tpu_custom_call.1} parent=5 // pred_check
        _
      $region38: #{tpu_custom_call.1} parent=5 // pred_check_branch
        %195 = sbr.rel (%p192) target = $region40
      $region39: #{tpu_custom_call.1} parent=5 // pred_region
        %s196 = ssub.s32 %s14, 1
        %s197 = smul.u32 2, %s19
        %p198 = scmp.lt.s32.totalorder %s197, 3
        %s199 = scalar_select %p198, %s197, 3
        %s200 = smul.addr %s199, 4
        %s201 = scalar_lea.vmem %s0, %s200
        %p202 = pneg %p40
        %p203 = pneg %p37
        %p204 = pneg %p61
        %p205 = pneg %p58
        %p206 = pneg %p82
        %p207 = pneg %p79
        %p208 = pneg %p103
        %p209 = pneg %p100
        %p210 = pneg %p124
        %p211 = pneg %p121
        %p212 = pneg %p150
        %p213 = pneg %p147
        %s214 = sand.u32 %s137, 1
        %s215 = scalar_lea.sflag [#allocation3], %s214
        %s216 = sand.u32 %s137, 1
        %s217 = smul.addr %s216, 2
        %s218 = scalar_lea.vmem [#allocation2], %s217
        %s219 = smul.u32 2, %s19
        %p220 = scmp.lt.s32.totalorder %s219, 3
        %s221 = scalar_select %p220, %s219, 3
        %s222 = smul.addr %s221, 4
        %s223 = scalar_lea.vmem %s0, %s222
        %s224 = smul.u32 2, %s19
        %s225 = smul.u32 2, %s19
        %v227 = vld [vmem:[%s223] sm:$0xff]
        %v228 = vld [vmem:[%s4] sm:$0xff]
        %v229 = vld [vmem:[%s4 + $0x8] sm:$0xff]
        %v230 = vld [vmem:[%s4 + $0x10] sm:$0xff]
        %v231 = vld [vmem:[%s4 + $0x18] sm:$0xff]
        %v232 = vld [vmem:[%s4 + $0x20] sm:$0xff]
        %v233 = vld [vmem:[%s4 + $0x28] sm:$0xff]
        %v234 = vld [vmem:[%s4 + $0x30] sm:$0xff]
        %v235 = vld [vmem:[%s4 + $0x38] sm:$0xff]
        %v236 = vld [vmem:[%s4 + $0x40] sm:$0xff]
        %v237 = vld [vmem:[%s4 + $0x48] sm:$0xff]
        %v238 = vld [vmem:[%s4 + $0x50] sm:$0xff]
        %v239 = vld [vmem:[%s4 + $0x58] sm:$0xff]
        %v240 = vld [vmem:[%s4 + $0x60] sm:$0xff]
        %v241 = vld [vmem:[%s4 + $0x68] sm:$0xff]
        %v242 = vld [vmem:[%s4 + $0x70] sm:$0xff]
        %v243 = vld [vmem:[%s4 + $0x78] sm:$0xff]
        %v244 = vld [vmem:[%s1] sm:$0xf]
        %v245 = vld [vmem:[%s1 + $0x4] sm:$0xf]
        %v246 = vld [vmem:[%s1 + $0x8] sm:$0xf]
        %v247 = vld [vmem:[%s1 + $0xc] sm:$0xf]
        %v248 = vld [vmem:[%s1 + $0x10] sm:$0xf]
        %v249 = vld [vmem:[%s1 + $0x14] sm:$0xf]
        %v250 = vld [vmem:[%s1 + $0x18] sm:$0xf]
        %v251 = vld [vmem:[%s1 + $0x1c] sm:$0xf]
        %v252 = vld [vmem:[%s1 + $0x20] sm:$0xf]
        %v253 = vld [vmem:[%s1 + $0x24] sm:$0xf]
        %v254 = vld [vmem:[%s1 + $0x28] sm:$0xf]
        %v255 = vld [vmem:[%s1 + $0x2c] sm:$0xf]
        %v256 = vld [vmem:[%s1 + $0x30] sm:$0xf]
        %v257 = vld [vmem:[%s1 + $0x34] sm:$0xf]
        %v258 = vld [vmem:[%s1 + $0x38] sm:$0xf]
        %v259 = vld [vmem:[%s1 + $0x3c] sm:$0xf]
        %261 = vset.pattern.permute.xlu0 0
        %262 = vperm.xlu0 %261, %v228
        %v263 = vpop.permute.xlu0 %262
        %266 = vset.pattern.permute.xlu0 0
        %267 = vperm.xlu0 %266, %v229
        %v268 = vpop.permute.xlu0 %267
        %271 = vset.pattern.permute.xlu0 0
        %272 = vperm.xlu0 %271, %v230
        %v273 = vpop.permute.xlu0 %272
        %276 = vset.pattern.permute.xlu0 0
        %277 = vperm.xlu0 %276, %v231
        %v278 = vpop.permute.xlu0 %277
        %281 = vset.pattern.permute.xlu0 0
        %282 = vperm.xlu0 %281, %v232
        %v283 = vpop.permute.xlu0 %282
        %286 = vset.pattern.permute.xlu0 0
        %287 = vperm.xlu0 %286, %v233
        %v288 = vpop.permute.xlu0 %287
        %291 = vset.pattern.permute.xlu0 0
        %292 = vperm.xlu0 %291, %v234
        %v293 = vpop.permute.xlu0 %292
        %296 = vset.pattern.permute.xlu0 0
        %297 = vperm.xlu0 %296, %v235
        %v298 = vpop.permute.xlu0 %297
        %301 = vset.pattern.permute.xlu0 0
        %302 = vperm.xlu0 %301, %v236
        %v303 = vpop.permute.xlu0 %302
        %306 = vset.pattern.permute.xlu0 0
        %307 = vperm.xlu0 %306, %v237
        %v308 = vpop.permute.xlu0 %307
        %311 = vset.pattern.permute.xlu0 0
        %312 = vperm.xlu0 %311, %v238
        %v313 = vpop.permute.xlu0 %312
        %316 = vset.pattern.permute.xlu0 0
        %317 = vperm.xlu0 %316, %v239
        %v318 = vpop.permute.xlu0 %317
        %321 = vset.pattern.permute.xlu0 0
        %322 = vperm.xlu0 %321, %v240
        %v323 = vpop.permute.xlu0 %322
        %326 = vset.pattern.permute.xlu0 0
        %327 = vperm.xlu0 %326, %v241
        %v328 = vpop.permute.xlu0 %327
        %331 = vset.pattern.permute.xlu0 0
        %332 = vperm.xlu0 %331, %v242
        %v333 = vpop.permute.xlu0 %332
        %336 = vset.pattern.permute.xlu0 0
        %337 = vperm.xlu0 %336, %v243
        %v338 = vpop.permute.xlu0 %337
        %v356 = vunpack.c.l.b16 %v244
        %v357 = vunpack.c.l.b16 %v245
        %v358 = vunpack.c.l.b16 %v246
        %v359 = vunpack.c.l.b16 %v247
        %v360 = vunpack.c.l.b16 %v248
        %v361 = vunpack.c.l.b16 %v249
        %v362 = vunpack.c.l.b16 %v250
        %v363 = vunpack.c.l.b16 %v251
        %v364 = vunpack.c.l.b16 %v252
        %v365 = vunpack.c.l.b16 %v253
        %v366 = vunpack.c.l.b16 %v254
        %v367 = vunpack.c.l.b16 %v255
        %v368 = vunpack.c.l.b16 %v256
        %v369 = vunpack.c.l.b16 %v257
        %v370 = vunpack.c.l.b16 %v258
        %v371 = vunpack.c.l.b16 %v259
        %v372 = vpack.c.b16 %v357, %v356
        %v373 = vpack.c.b16 %v359, %v358
        %v374 = vpack.c.b16 %v361, %v360
        %v375 = vpack.c.b16 %v363, %v362
        %v376 = vpack.c.b16 %v365, %v364
        %v377 = vpack.c.b16 %v367, %v366
        %v378 = vpack.c.b16 %v369, %v368
        %v379 = vpack.c.b16 %v371, %v370
        %v381 = vunpack.c.l.b16 %v227
        %v382 = vunpack.c.h.b16 %v227
        %v383 = vpack.c.b16 %v381, %v381
        %v384 = vpack.c.b16 %v382, %v382
        %vm385 = vcmask 64512
        %v387 = vsel %vm385, %v372, 0
        %v390 = vsel %vm385, %v373, 0
        %v393 = vsel %vm385, %v374, 0
        %v396 = vsel %vm385, %v375, 0
        %v399 = vsel %vm385, %v376, 0
        %v402 = vsel %vm385, %v377, 0
        %v405 = vsel %vm385, %v378, 0
        %v408 = vsel %vm385, %v379, 0
        %vm410 = vcmask 1043456
        %v412 = vsel %vm410, %v383, 0
        %v415 = vsel %vm410, %v384, 0
        %417 = vmatpush.bf16.msra.mxu0 0
        %418 = vmatpush.bf16.msra.mxu0 0
        %419 = vmatpush.bf16.msra.mxu0 0
        %420 = vmatpush.bf16.msra.mxu0 0
        %421 = vmatpush.bf16.msra.mxu0 0
        %422 = vmatpush.bf16.msra.mxu0 0
        %423 = vmatpush.bf16.msra.mxu0 0
        %424 = vmatpush.bf16.msra.mxu0 %v412
        %425 = vmatmul.bf16.gmra.mxu0 %v387
        %v426 = vpop.f32.mrf.mxu0
        %v427 = vadd.f32 %v263, %v426
        %v428 = vpop.f32.mrf.mxu0
        %v429 = vadd.f32 %v268, %v428
        %430 = vmatmul.bf16.gmra.mxu0 %v390
        %v431 = vpop.f32.mrf.mxu0
        %v432 = vadd.f32 %v273, %v431
        %v433 = vpop.f32.mrf.mxu0
        %v434 = vadd.f32 %v278, %v433
        %435 = vmatmul.bf16.gmra.mxu0 %v393
        %v436 = vpop.f32.mrf.mxu0
        %v437 = vadd.f32 %v283, %v436
        %v438 = vpop.f32.mrf.mxu0
        %v439 = vadd.f32 %v288, %v438
        %440 = vmatmul.bf16.gmra.mxu0 %v396
        %v441 = vpop.f32.mrf.mxu0
        %v442 = vadd.f32 %v293, %v441
        %v443 = vpop.f32.mrf.mxu0
        %v444 = vadd.f32 %v298, %v443
        %445 = vmatmul.bf16.gmra.mxu0 %v399
        %v446 = vpop.f32.mrf.mxu0
        %v447 = vadd.f32 %v303, %v446
        %v448 = vpop.f32.mrf.mxu0
        %v449 = vadd.f32 %v308, %v448
        %450 = vmatmul.bf16.gmra.mxu0 %v402
        %v451 = vpop.f32.mrf.mxu0
        %v452 = vadd.f32 %v313, %v451
        %v453 = vpop.f32.mrf.mxu0
        %v454 = vadd.f32 %v318, %v453
        %455 = vmatmul.bf16.gmra.mxu0 %v405
        %v456 = vpop.f32.mrf.mxu0
        %v457 = vadd.f32 %v323, %v456
        %v458 = vpop.f32.mrf.mxu0
        %v459 = vadd.f32 %v328, %v458
        %460 = vmatmul.bf16.gmra.mxu0 %v408
        %v461 = vpop.f32.mrf.mxu0
        %v462 = vadd.f32 %v333, %v461
        %v463 = vpop.f32.mrf.mxu0
        %v464 = vadd.f32 %v338, %v463
        %465 = vdwg.mxu0
        %466 = vmatpush.bf16.msra.mxu0 0
        %467 = vmatpush.bf16.msra.mxu0 0
        %468 = vmatpush.bf16.msra.mxu0 0
        %469 = vmatpush.bf16.msra.mxu0 0
        %470 = vmatpush.bf16.msra.mxu0 0
        %471 = vmatpush.bf16.msra.mxu0 0
        %472 = vmatpush.bf16.msra.mxu0 0
        %473 = vmatpush.bf16.msra.mxu0 %v415
        %474 = vmatmul.bf16.gmra.mxu0 %v387
        %v475 = vpop.f32.mrf.mxu0
        %v476 = vadd.f32 %v263, %v475
        %v477 = vpop.f32.mrf.mxu0
        %v478 = vadd.f32 %v268, %v477
        %479 = vmatmul.bf16.gmra.mxu0 %v390
        %v480 = vpop.f32.mrf.mxu0
        %v481 = vadd.f32 %v273, %v480
        %v482 = vpop.f32.mrf.mxu0
        %v483 = vadd.f32 %v278, %v482
        %484 = vmatmul.bf16.gmra.mxu0 %v393
        %v485 = vpop.f32.mrf.mxu0
        %v486 = vadd.f32 %v283, %v485
        %v487 = vpop.f32.mrf.mxu0
        %v488 = vadd.f32 %v288, %v487
        %489 = vmatmul.bf16.gmra.mxu0 %v396
        %v490 = vpop.f32.mrf.mxu0
        %v491 = vadd.f32 %v293, %v490
        %v492 = vpop.f32.mrf.mxu0
        %v493 = vadd.f32 %v298, %v492
        %494 = vmatmul.bf16.gmra.mxu0 %v399
        %v495 = vpop.f32.mrf.mxu0
        %v496 = vadd.f32 %v303, %v495
        %v497 = vpop.f32.mrf.mxu0
        %v498 = vadd.f32 %v308, %v497
        %499 = vmatmul.bf16.gmra.mxu0 %v402
        %v500 = vpop.f32.mrf.mxu0
        %v501 = vadd.f32 %v313, %v500
        %v502 = vpop.f32.mrf.mxu0
        %v503 = vadd.f32 %v318, %v502
        %504 = vmatmul.bf16.gmra.mxu0 %v405
        %v505 = vpop.f32.mrf.mxu0
        %v506 = vadd.f32 %v323, %v505
        %v507 = vpop.f32.mrf.mxu0
        %v508 = vadd.f32 %v328, %v507
        %509 = vmatmul.bf16.gmra.mxu0 %v408
        %v510 = vpop.f32.mrf.mxu0
        %v511 = vadd.f32 %v333, %v510
        %v512 = vpop.f32.mrf.mxu0
        %v513 = vadd.f32 %v338, %v512
        %514 = vdwg.mxu0
        %v515 = vmax.f32 %v427, 0.0
        %v516 = vmax.f32 %v476, 0.0
        %v517 = vmax.f32 %v429, 0.0
        %v518 = vmax.f32 %v478, 0.0
        %v519 = vmax.f32 %v432, 0.0
        %v520 = vmax.f32 %v481, 0.0
        %v521 = vmax.f32 %v434, 0.0
        %v522 = vmax.f32 %v483, 0.0
        %v523 = vmax.f32 %v437, 0.0
        %v524 = vmax.f32 %v486, 0.0
        %v525 = vmax.f32 %v439, 0.0
        %v526 = vmax.f32 %v488, 0.0
        %v527 = vmax.f32 %v442, 0.0
        %v528 = vmax.f32 %v491, 0.0
        %v529 = vmax.f32 %v444, 0.0
        %v530 = vmax.f32 %v493, 0.0
        %v531 = vmax.f32 %v447, 0.0
        %v532 = vmax.f32 %v496, 0.0
        %v533 = vmax.f32 %v449, 0.0
        %v534 = vmax.f32 %v498, 0.0
        %v535 = vmax.f32 %v452, 0.0
        %v536 = vmax.f32 %v501, 0.0
        %v537 = vmax.f32 %v454, 0.0
        %v538 = vmax.f32 %v503, 0.0
        %v539 = vmax.f32 %v457, 0.0
        %v540 = vmax.f32 %v506, 0.0
        %v541 = vmax.f32 %v459, 0.0
        %v542 = vmax.f32 %v508, 0.0
        %v543 = vmax.f32 %v462, 0.0
        %v544 = vmax.f32 %v511, 0.0
        %v545 = vmax.f32 %v464, 0.0
        %v546 = vmax.f32 %v513, 0.0
        %v547 = vld [vmem:[%s2] sm:$0xf]
        %v548 = vld [vmem:[%s2 + $0x4] sm:$0xf]
        %v549 = vld [vmem:[%s2 + $0x8] sm:$0xf]
        %v550 = vld [vmem:[%s2 + $0xc] sm:$0xf]
        %v551 = vld [vmem:[%s2 + $0x10] sm:$0xf]
        %v552 = vld [vmem:[%s2 + $0x14] sm:$0xf]
        %v553 = vld [vmem:[%s2 + $0x18] sm:$0xf]
        %v554 = vld [vmem:[%s2 + $0x1c] sm:$0xf]
        %v555 = vld [vmem:[%s2 + $0x20] sm:$0xf]
        %v556 = vld [vmem:[%s2 + $0x24] sm:$0xf]
        %v557 = vld [vmem:[%s2 + $0x28] sm:$0xf]
        %v558 = vld [vmem:[%s2 + $0x2c] sm:$0xf]
        %v559 = vld [vmem:[%s2 + $0x30] sm:$0xf]
        %v560 = vld [vmem:[%s2 + $0x34] sm:$0xf]
        %v561 = vld [vmem:[%s2 + $0x38] sm:$0xf]
        %v562 = vld [vmem:[%s2 + $0x3c] sm:$0xf]
        %v563 = vpack.c.bf16 %v517, %v515
        %v564 = vpack.c.bf16 %v518, %v516
        %v565 = vpack.c.bf16 %v521, %v519
        %v566 = vpack.c.bf16 %v522, %v520
        %v567 = vpack.c.bf16 %v525, %v523
        %v568 = vpack.c.bf16 %v526, %v524
        %v569 = vpack.c.bf16 %v529, %v527
        %v570 = vpack.c.bf16 %v530, %v528
        %v571 = vpack.c.bf16 %v533, %v531
        %v572 = vpack.c.bf16 %v534, %v532
        %v573 = vpack.c.bf16 %v537, %v535
        %v574 = vpack.c.bf16 %v538, %v536
        %v575 = vpack.c.bf16 %v541, %v539
        %v576 = vpack.c.bf16 %v542, %v540
        %v577 = vpack.c.bf16 %v545, %v543
        %v578 = vpack.c.bf16 %v546, %v544
        %579 = vset.pattern.permute.xlu0 1
        %580 = vperm.xlu0 %579, %v228
        %v581 = vpop.permute.xlu0 %580
        %583 = vset.pattern.permute.xlu0 1
        %584 = vperm.xlu0 %583, %v229
        %v585 = vpop.permute.xlu0 %584
        %587 = vset.pattern.permute.xlu0 1
        %588 = vperm.xlu0 %587, %v230
        %v589 = vpop.permute.xlu0 %588
        %591 = vset.pattern.permute.xlu0 1
        %592 = vperm.xlu0 %591, %v231
        %v593 = vpop.permute.xlu0 %592
        %595 = vset.pattern.permute.xlu0 1
        %596 = vperm.xlu0 %595, %v232
        %v597 = vpop.permute.xlu0 %596
        %599 = vset.pattern.permute.xlu0 1
        %600 = vperm.xlu0 %599, %v233
        %v601 = vpop.permute.xlu0 %600
        %603 = vset.pattern.permute.xlu0 1
        %604 = vperm.xlu0 %603, %v234
        %v605 = vpop.permute.xlu0 %604
        %607 = vset.pattern.permute.xlu0 1
        %608 = vperm.xlu0 %607, %v235
        %v609 = vpop.permute.xlu0 %608
        %611 = vset.pattern.permute.xlu0 1
        %612 = vperm.xlu0 %611, %v236
        %v613 = vpop.permute.xlu0 %612
        %615 = vset.pattern.permute.xlu0 1
        %616 = vperm.xlu0 %615, %v237
        %v617 = vpop.permute.xlu0 %616
        %619 = vset.pattern.permute.xlu0 1
        %620 = vperm.xlu0 %619, %v238
        %v621 = vpop.permute.xlu0 %620
        %623 = vset.pattern.permute.xlu0 1
        %624 = vperm.xlu0 %623, %v239
        %v625 = vpop.permute.xlu0 %624
        %627 = vset.pattern.permute.xlu0 1
        %628 = vperm.xlu0 %627, %v240
        %v629 = vpop.permute.xlu0 %628
        %631 = vset.pattern.permute.xlu0 1
        %632 = vperm.xlu0 %631, %v241
        %v633 = vpop.permute.xlu0 %632
        %635 = vset.pattern.permute.xlu0 1
        %636 = vperm.xlu0 %635, %v242
        %v637 = vpop.permute.xlu0 %636
        %639 = vset.pattern.permute.xlu0 1
        %640 = vperm.xlu0 %639, %v243
        %v641 = vpop.permute.xlu0 %640
        %v659 = vunpack.c.l.b16 %v547
        %v660 = vunpack.c.l.b16 %v548
        %v661 = vunpack.c.l.b16 %v549
        %v662 = vunpack.c.l.b16 %v550
        %v663 = vunpack.c.l.b16 %v551
        %v664 = vunpack.c.l.b16 %v552
        %v665 = vunpack.c.l.b16 %v553
        %v666 = vunpack.c.l.b16 %v554
        %v667 = vunpack.c.l.b16 %v555
        %v668 = vunpack.c.l.b16 %v556
        %v669 = vunpack.c.l.b16 %v557
        %v670 = vunpack.c.l.b16 %v558
        %v671 = vunpack.c.l.b16 %v559
        %v672 = vunpack.c.l.b16 %v560
        %v673 = vunpack.c.l.b16 %v561
        %v674 = vunpack.c.l.b16 %v562
        %v675 = vpack.c.b16 %v660, %v659
        %v676 = vpack.c.b16 %v662, %v661
        %v677 = vpack.c.b16 %v664, %v663
        %v678 = vpack.c.b16 %v666, %v665
        %v679 = vpack.c.b16 %v668, %v667
        %v680 = vpack.c.b16 %v670, %v669
        %v681 = vpack.c.b16 %v672, %v671
        %v682 = vpack.c.b16 %v674, %v673
        %691 = vmatpush.bf16.msra.mxu0 %v577
        %692 = vmatpush.bf16.msra.mxu0 %v575
        %693 = vmatpush.bf16.msra.mxu0 %v573
        %694 = vmatpush.bf16.msra.mxu0 %v571
        %695 = vmatpush.bf16.msra.mxu0 %v569
        %696 = vmatpush.bf16.msra.mxu0 %v567
        %697 = vmatpush.bf16.msra.mxu0 %v565
        %698 = vmatpush.bf16.msra.mxu0 %v563
        %699 = vmatmul.bf16.gmra.mxu0 %v675
        %v700 = vpop.f32.mrf.mxu0
        %v701 = vadd.f32 %v581, %v700
        %v702 = vpop.f32.mrf.mxu0
        %v703 = vadd.f32 %v585, %v702
        %704 = vmatmul.bf16.gmra.mxu0 %v676
        %v705 = vpop.f32.mrf.mxu0
        %v706 = vadd.f32 %v589, %v705
        %v707 = vpop.f32.mrf.mxu0
        %v708 = vadd.f32 %v593, %v707
        %709 = vmatmul.bf16.gmra.mxu0 %v677
        %v710 = vpop.f32.mrf.mxu0
        %v711 = vadd.f32 %v597, %v710
        %v712 = vpop.f32.mrf.mxu0
        %v713 = vadd.f32 %v601, %v712
        %714 = vmatmul.bf16.gmra.mxu0 %v678
        %v715 = vpop.f32.mrf.mxu0
        %v716 = vadd.f32 %v605, %v715
        %v717 = vpop.f32.mrf.mxu0
        %v718 = vadd.f32 %v609, %v717
        %719 = vmatmul.bf16.gmra.mxu0 %v679
        %v720 = vpop.f32.mrf.mxu0
        %v721 = vadd.f32 %v613, %v720
        %v722 = vpop.f32.mrf.mxu0
        %v723 = vadd.f32 %v617, %v722
        %724 = vmatmul.bf16.gmra.mxu0 %v680
        %v725 = vpop.f32.mrf.mxu0
        %v726 = vadd.f32 %v621, %v725
        %v727 = vpop.f32.mrf.mxu0
        %v728 = vadd.f32 %v625, %v727
        %729 = vmatmul.bf16.gmra.mxu0 %v681
        %v730 = vpop.f32.mrf.mxu0
        %v731 = vadd.f32 %v629, %v730
        %v732 = vpop.f32.mrf.mxu0
        %v733 = vadd.f32 %v633, %v732
        %734 = vmatmul.bf16.gmra.mxu0 %v682
        %v735 = vpop.f32.mrf.mxu0
        %v736 = vadd.f32 %v637, %v735
        %v737 = vpop.f32.mrf.mxu0
        %v738 = vadd.f32 %v641, %v737
        %739 = vdwg.mxu0
        %740 = vmatpush.bf16.msra.mxu0 %v578
        %741 = vmatpush.bf16.msra.mxu0 %v576
        %742 = vmatpush.bf16.msra.mxu0 %v574
        %743 = vmatpush.bf16.msra.mxu0 %v572
        %744 = vmatpush.bf16.msra.mxu0 %v570
        %745 = vmatpush.bf16.msra.mxu0 %v568
        %746 = vmatpush.bf16.msra.mxu0 %v566
        %747 = vmatpush.bf16.msra.mxu0 %v564
        %748 = vmatmul.bf16.gmra.mxu0 %v675
        %v749 = vpop.f32.mrf.mxu0
        %v750 = vadd.f32 %v581, %v749
        %v751 = vpop.f32.mrf.mxu0
        %v752 = vadd.f32 %v585, %v751
        %753 = vmatmul.bf16.gmra.mxu0 %v676
        %v754 = vpop.f32.mrf.mxu0
        %v755 = vadd.f32 %v589, %v754
        %v756 = vpop.f32.mrf.mxu0
        %v757 = vadd.f32 %v593, %v756
        %758 = vmatmul.bf16.gmra.mxu0 %v677
        %v759 = vpop.f32.mrf.mxu0
        %v760 = vadd.f32 %v597, %v759
        %v761 = vpop.f32.mrf.mxu0
        %v762 = vadd.f32 %v601, %v761
        %763 = vmatmul.bf16.gmra.mxu0 %v678
        %v764 = vpop.f32.mrf.mxu0
        %v765 = vadd.f32 %v605, %v764
        %v766 = vpop.f32.mrf.mxu0
        %v767 = vadd.f32 %v609, %v766
        %768 = vmatmul.bf16.gmra.mxu0 %v679
        %v769 = vpop.f32.mrf.mxu0
        %v770 = vadd.f32 %v613, %v769
        %v771 = vpop.f32.mrf.mxu0
        %v772 = vadd.f32 %v617, %v771
        %773 = vmatmul.bf16.gmra.mxu0 %v680
        %v774 = vpop.f32.mrf.mxu0
        %v775 = vadd.f32 %v621, %v774
        %v776 = vpop.f32.mrf.mxu0
        %v777 = vadd.f32 %v625, %v776
        %778 = vmatmul.bf16.gmra.mxu0 %v681
        %v779 = vpop.f32.mrf.mxu0
        %v780 = vadd.f32 %v629, %v779
        %v781 = vpop.f32.mrf.mxu0
        %v782 = vadd.f32 %v633, %v781
        %783 = vmatmul.bf16.gmra.mxu0 %v682
        %v784 = vpop.f32.mrf.mxu0
        %v785 = vadd.f32 %v637, %v784
        %v786 = vpop.f32.mrf.mxu0
        %v787 = vadd.f32 %v641, %v786
        %788 = vdwg.mxu0
        %v789 = vmax.f32 %v701, 0.0
        %v790 = vmax.f32 %v750, 0.0
        %v791 = vmax.f32 %v703, 0.0
        %v792 = vmax.f32 %v752, 0.0
        %v793 = vmax.f32 %v706, 0.0
        %v794 = vmax.f32 %v755, 0.0
        %v795 = vmax.f32 %v708, 0.0
        %v796 = vmax.f32 %v757, 0.0
        %v797 = vmax.f32 %v711, 0.0
        %v798 = vmax.f32 %v760, 0.0
        %v799 = vmax.f32 %v713, 0.0
        %v800 = vmax.f32 %v762, 0.0
        %v801 = vmax.f32 %v716, 0.0
        %v802 = vmax.f32 %v765, 0.0
        %v803 = vmax.f32 %v718, 0.0
        %v804 = vmax.f32 %v767, 0.0
        %v805 = vmax.f32 %v721, 0.0
        %v806 = vmax.f32 %v770, 0.0
        %v807 = vmax.f32 %v723, 0.0
        %v808 = vmax.f32 %v772, 0.0
        %v809 = vmax.f32 %v726, 0.0
        %v810 = vmax.f32 %v775, 0.0
        %v811 = vmax.f32 %v728, 0.0
        %v812 = vmax.f32 %v777, 0.0
        %v813 = vmax.f32 %v731, 0.0
        %v814 = vmax.f32 %v780, 0.0
        %v815 = vmax.f32 %v733, 0.0
        %v816 = vmax.f32 %v782, 0.0
        %v817 = vmax.f32 %v736, 0.0
        %v818 = vmax.f32 %v785, 0.0
        %v819 = vmax.f32 %v738, 0.0
        %v820 = vmax.f32 %v787, 0.0
        %v821 = vld [vmem:[%s3] sm:$0xf]
        %v822 = vld [vmem:[%s3 + $0x4] sm:$0xf]
        %v823 = vld [vmem:[%s3 + $0x8] sm:$0xf]
        %v824 = vld [vmem:[%s3 + $0xc] sm:$0xf]
        %v825 = vpack.c.bf16 %v791, %v789
        %v826 = vpack.c.bf16 %v792, %v790
        %v827 = vpack.c.bf16 %v795, %v793
        %v828 = vpack.c.bf16 %v796, %v794
        %v829 = vpack.c.bf16 %v799, %v797
        %v830 = vpack.c.bf16 %v800, %v798
        %v831 = vpack.c.bf16 %v803, %v801
        %v832 = vpack.c.bf16 %v804, %v802
        %v833 = vpack.c.bf16 %v807, %v805
        %v834 = vpack.c.bf16 %v808, %v806
        %v835 = vpack.c.bf16 %v811, %v809
        %v836 = vpack.c.bf16 %v812, %v810
        %v837 = vpack.c.bf16 %v815, %v813
        %v838 = vpack.c.bf16 %v816, %v814
        %v839 = vpack.c.bf16 %v819, %v817
        %v840 = vpack.c.bf16 %v820, %v818
        %841 = vset.pattern.permute.xlu0 2
        %842 = vperm.xlu0 %841, %v228
        %v843 = vpop.permute.xlu0 %842
        %845 = vset.pattern.permute.xlu0 2
        %846 = vperm.xlu0 %845, %v229
        %v847 = vpop.permute.xlu0 %846
        %849 = vset.pattern.permute.xlu0 2
        %850 = vperm.xlu0 %849, %v230
        %v851 = vpop.permute.xlu0 %850
        %853 = vset.pattern.permute.xlu0 2
        %854 = vperm.xlu0 %853, %v231
        %v855 = vpop.permute.xlu0 %854
        %v861 = vunpack.c.l.b16 %v821
        %v862 = vunpack.c.l.b16 %v822
        %v863 = vunpack.c.l.b16 %v823
        %v864 = vunpack.c.l.b16 %v824
        %v865 = vpack.c.b16 %v862, %v861
        %v866 = vpack.c.b16 %v864, %v863
        %869 = vmatpush.bf16.msra.mxu0 %v839
        %870 = vmatpush.bf16.msra.mxu0 %v837
        %871 = vmatpush.bf16.msra.mxu0 %v835
        %872 = vmatpush.bf16.msra.mxu0 %v833
        %873 = vmatpush.bf16.msra.mxu0 %v831
        %874 = vmatpush.bf16.msra.mxu0 %v829
        %875 = vmatpush.bf16.msra.mxu0 %v827
        %876 = vmatpush.bf16.msra.mxu0 %v825
        %877 = vmatmul.bf16.gmra.mxu0 %v865
        %v878 = vpop.f32.mrf.mxu0
        %v879 = vadd.f32 %v843, %v878
        %v880 = vpop.f32.mrf.mxu0
        %v881 = vadd.f32 %v847, %v880
        %882 = vmatmul.bf16.gmra.mxu0 %v866
        %v883 = vpop.f32.mrf.mxu0
        %v884 = vadd.f32 %v851, %v883
        %v885 = vpop.f32.mrf.mxu0
        %v886 = vadd.f32 %v855, %v885
        %887 = vdwg.mxu0
        %888 = vmatpush.bf16.msra.mxu0 %v840
        %889 = vmatpush.bf16.msra.mxu0 %v838
        %890 = vmatpush.bf16.msra.mxu0 %v836
        %891 = vmatpush.bf16.msra.mxu0 %v834
        %892 = vmatpush.bf16.msra.mxu0 %v832
        %893 = vmatpush.bf16.msra.mxu0 %v830
        %894 = vmatpush.bf16.msra.mxu0 %v828
        %895 = vmatpush.bf16.msra.mxu0 %v826
        %896 = vmatmul.bf16.gmra.mxu0 %v865
        %v897 = vpop.f32.mrf.mxu0
        %v898 = vadd.f32 %v843, %v897
        %v899 = vpop.f32.mrf.mxu0
        %v900 = vadd.f32 %v847, %v899
        %901 = vmatmul.bf16.gmra.mxu0 %v866
        %v902 = vpop.f32.mrf.mxu0
        %v903 = vadd.f32 %v851, %v902
        %v904 = vpop.f32.mrf.mxu0
        %v905 = vadd.f32 %v855, %v904
        %906 = vdwg.mxu0
        %v907 = vmax.f32 %v879, 0.0
        %v908 = vmax.f32 %v898, 0.0
        %v909 = vmax.f32 %v881, 0.0
        %v910 = vmax.f32 %v900, 0.0
        %v911 = vmax.f32 %v884, 0.0
        %v912 = vmax.f32 %v903, 0.0
        %v913 = vmax.f32 %v886, 0.0
        %v914 = vmax.f32 %v905, 0.0
        %915 = vset.pattern.permute.xlu0 3
        %916 = vperm.xlu0 %915, %v228
        %v917 = vpop.permute.xlu0 %916
        %919 = vset.pattern.permute.xlu0 3
        %920 = vperm.xlu0 %919, %v229
        %v921 = vpop.permute.xlu0 %920
        %923 = vset.pattern.permute.xlu0 3
        %924 = vperm.xlu0 %923, %v230
        %v925 = vpop.permute.xlu0 %924
        %927 = vset.pattern.permute.xlu0 3
        %928 = vperm.xlu0 %927, %v231
        %v929 = vpop.permute.xlu0 %928
        %v931 = vmul.f32 %v907, %v917
        %v932 = vmul.f32 %v908, %v917
        %v933 = vmul.f32 %v909, %v921
        %v934 = vmul.f32 %v910, %v921
        %v935 = vmul.f32 %v911, %v925
        %v936 = vmul.f32 %v912, %v925
        %v937 = vmul.f32 %v913, %v929
        %v938 = vmul.f32 %v914, %v929
        %v939 = vadd.f32 %v931, %v933
        %v940 = vadd.f32 %v939, %v935
        %v941 = vadd.f32 %v940, %v937
        %v942 = vrot.slane %v941, 4
        %v943 = vadd.f32 %v941, %v942
        %v944 = vrot.slane %v943, 2
        %v945 = vadd.f32 %v943, %v944
        %v946 = vrot.slane %v945, 1
        %v947 = vadd.f32 %v945, %v946
        %v948 = vadd.f32 %v932, %v934
        %v949 = vadd.f32 %v948, %v936
        %v950 = vadd.f32 %v949, %v938
        %v951 = vrot.slane %v950, 4
        %v952 = vadd.f32 %v950, %v951
        %v953 = vrot.slane %v952, 2
        %v954 = vadd.f32 %v952, %v953
        %v955 = vrot.slane %v954, 1
        %v956 = vadd.f32 %v954, %v955
        %957 = vset.pattern.permute.xlu0 4
        %958 = vperm.xlu0 %957, %v228
        %v959 = vpop.permute.xlu0 %958
        %v961 = vadd.f32 %v947, %v959
        %v962 = vadd.f32 %v956, %v959
        %v965 = vrot.slane %v962, 7
        %vm966 = vcmask 1040384
        %v967 = vsel %vm966, %v961, %v965
        %v969 = vlaneseq
        %vm970 = vcmp.ge.s32.totalorder %v969, 0
        %vm971 = vcmp.lt.s32.totalorder %v969, 256
        %vm972 = vmand %vm970, %vm971
        %973 = vst.msk [vmem:[%s218] sm:$0x3] %vm972, %v967
        %s974 = sand.u32 %s137, 1
        %s975 = scalar_lea.sflag [#allocation3], %s974
        %s976 = sand.u32 %s137, 1
        %s977 = smul.addr %s976, 2
        %s978 = scalar_lea.vmem [#allocation2], %s977
        // Predicated region
        $region41: #{tpu_custom_call.1} parent=39 // pred_check
          %p979 = pneg %p147
        $region42: #{tpu_custom_call.1} parent=39 // pred_check_branch
          %981 = sbr.rel (%p979) target = $region44
        $region43: #{tpu_custom_call.1} parent=39 // pred_region
          %s982 = smul.u32 2, %s19
          %984 = vsyncadd %s975, 0
          %s985 = scalar_lea.hbm %s5, %s982
          %s987 = sshll.u32 %s978, 4
          %s988 = int_to_ptr.vmem [resolvable:$true] %s987
          %s989 = sshll.u32 %s985, 4
          %s990 = int_to_ptr.hbm [resolvable:$true] %s989
          %992 = dma.vmem_to_hbm [thread:$0]  %s988, 32, %s990, %s975
        $region44: #{tpu_custom_call.1} parent=39 // pred_fallthru
          _
      $region40: #{tpu_custom_call.1} parent=5 // pred_fallthru
        _
      %p993 = scmp.le.s32.totalorder 2, %s14
      // Predicated region
      $region45: #{tpu_custom_call.1} parent=5 // pred_check
        %p994 = pneg %p993
      $region46: #{tpu_custom_call.1} parent=5 // pred_check_branch
        %996 = sbr.rel (%p994) target = $region48
      $region47: #{tpu_custom_call.1} parent=5 // pred_region
        %s997 = ssub.s32 %s14, 2
        // Predicated region
        $region49: #{tpu_custom_call.1} parent=47 // pred_check
          %p998 = pneg %p153
        $region50: #{tpu_custom_call.1} parent=47 // pred_check_branch
          %1000 = sbr.rel (%p998) target = $region52
        $region51: #{tpu_custom_call.1} parent=47 // pred_region
          %s1001 = sand.u32 %s138, 1
          %s1002 = scalar_lea.sflag [#allocation3], %s1001
          %s1003 = sand.u32 %s138, 1
          %s1004 = smul.addr %s1003, 2
          %s1005 = scalar_lea.vmem [#allocation2], %s1004
          %1007 = dma.done %s1002, 32
        $region52: #{tpu_custom_call.1} parent=47 // pred_fallthru
          _
      $region48: #{tpu_custom_call.1} parent=5 // pred_fallthru
        _
    $region6: #{tpu_custom_call.1} parent=1 // loop_footer
      %s18 = sadd.s32 1, %s14
    $region7: #{tpu_custom_call.1} parent=1 // loop_footer_branch
      %13 = sbr.rel target = $region3
    $region8: #{tpu_custom_call.1} parent=1 // loop_exit
      _
    %1008 = vsyncpa [#allocation3], 1
    %s1009 = scalar_lea.sflag [#allocation3], 1
    %1010 = vsyncpa %s1009, 1

</llo_original>
